<compile_context>
chip_gen: v7x
topology: tpu7x:2x2x1
jax: 0.10.0
libtpu: 0.0.40
codegen_flags: <defaults>
</compile_context>

<pallas_src>
import functools

import jax
import jax.numpy as jnp
from jax import lax
from jax.experimental import pallas as pl
from jax.experimental.pallas import tpu as pltpu

block_size = 8
dropout = 0.2            # unused: eval-mode (identity) dropout
n_embd = 32
NUM_HEADS = 4
HEAD_SIZE = n_embd // NUM_HEADS  # 8 — concat of heads is n_embd, matching self.proj

MXU_DTYPE = jnp.bfloat16  # MXU operand dtype; use jnp.float32 for bit-tight agreement


def mha_kernel(x_ref, w_ref, bias_ref, bp_ref, o_ref, *, H, hs):
    # x_ref:    (B*T, C)   bf16, all batch rows flattened (whole problem resident in VMEM)
    # w_ref:    (C, 2C+H*C) bf16 packed weights:
    #             lanes [0:C)    -> Q heads with C**-0.5 pre-folded
    #             lanes [C:2C)   -> K heads
    #             lanes [2C+h*C : 2C+(h+1)*C) -> Wvp_h = Wv_h @ Wp_rows_h  (V + out-proj folded)
    # bias_ref: (B*T, B*T) f32 additive causal/block mask (0 attendable, -1e30 otherwise)
    # bp_ref:   (1, C)     f32 output-projection bias
    # o_ref:    (B*T, C)   f32
    BT, C = o_ref.shape
    mxu_dtype = x_ref.dtype

    # One fused, lane-dense projection feeding everything downstream.
    proj = jnp.dot(x_ref[...], w_ref[...], preferred_element_type=jnp.float32)

    bias = bias_ref[...]
    acc = jnp.broadcast_to(bp_ref[...], (BT, C)).astype(jnp.float32)

    for h in range(H):  # H is small & static — unrolled at trace time
        q = proj[:, h * hs:(h + 1) * hs].astype(mxu_dtype)          # (BT, hs), pre-scaled
        k = proj[:, C + h * hs:C + (h + 1) * hs].astype(mxu_dtype)  # (BT, hs)

        # Q @ K^T without an explicit transpose (contract last dim with last dim),
        # masked with a single additive bias (no per-head select / scalar multiply).
        s = lax.dot_general(q, k, (((1,), (1,)), ((), ())),
                            preferred_element_type=jnp.float32) + bias      # (BT, BT)
        s = s - jnp.max(s, axis=-1, keepdims=True)   # keep this before exp: -1e30 stays safe
        p = jnp.exp(s)
        p = p * pl.reciprocal(jnp.sum(p, axis=-1, keepdims=True), approx=True)
        # TODO(synk): attention-weight dropout omitted (eval mode)

        xwvp_h = proj[:, 2 * C + h * C: 2 * C + (h + 1) * C].astype(mxu_dtype)  # (BT, C)
        acc = acc + jnp.dot(p.astype(mxu_dtype), xwvp_h,
                            preferred_element_type=jnp.float32)                 # (BT, C)

    # TODO(synk): output dropout omitted (eval mode)
    o_ref[...] = acc.astype(o_ref.dtype)


def pack_params(wq, wk, wv, wp, bp):
    """Pack all parameters ONCE into a single lane-dense (C, 2C + H*C) weight + (1, C) bias."""
    H, C, hs = wq.shape
    scale = C ** (-0.5)  # NOTE: reference scales by n_embd, not head_size
    wq_p = jnp.transpose(wq, (1, 0, 2)).reshape(C, H * hs) * scale   # scale folded into Q
    wk_p = jnp.transpose(wk, (1, 0, 2)).reshape(C, H * hs)
    # Fold per-head V with the matching rows of the output projection:
    #   Wvp_h = wv[h] @ wp[h*hs:(h+1)*hs, :]  -> (C, C); pack heads along lanes -> (C, H*C)
    wp_heads = wp.reshape(H, hs, C)
    wvp = jnp.einsum('hck,hkd->chd', wv, wp_heads).reshape(C, H * C)
    w_packed = jnp.concatenate([wq_p, wk_p, wvp], axis=-1)           # (C, 2C + H*C)
    return w_packed.astype(MXU_DTYPE), bp.reshape(1, C).astype(jnp.float32)


def _block_causal_bias(B, T):
    """Additive mask over the flattened (B*T) axis: 0 where attendable, -1e30 otherwise."""
    idx = jnp.arange(B * T)
    same_batch = (idx[:, None] // T) == (idx[None, :] // T)
    causal = idx[None, :] <= idx[:, None]
    return jnp.where(same_batch & causal, 0.0, -1e30).astype(jnp.float32)


def make_multi_head_attention(wq, wk, wv, wp, bp):
    """Pack weights once and return a jitted forward(x) closure (the intended inference path)."""
    H, C, hs = wq.shape
    w_packed, bp2 = pack_params(wq, wk, wv, wp, bp)
    kernel = functools.partial(mha_kernel, H=H, hs=hs)

    @jax.jit
    def forward(x):
        B, T, _ = x.shape
        BT = B * T
        xf = x.reshape(BT, C).astype(MXU_DTYPE)
        bias = _block_causal_bias(B, T)   # shape-static -> constant-folded under jit
        out = pl.pallas_call(
            kernel,
            out_shape=jax.ShapeDtypeStruct((BT, C), jnp.float32),
            # Whole problem is VMEM-resident: gridless call, no pipelining, no unused
            # double buffer. (At realistic sizes: add a "parallel" batch/query grid axis
            # for v7x's 2 TCs and stream keys flash-style instead.)
            in_specs=[pl.BlockSpec(memory_space=pltpu.MemorySpace.VMEM)] * 4,
            out_specs=pl.BlockSpec(memory_space=pltpu.MemorySpace.VMEM),
        )(xf, w_packed, bias, bp2)
        return out.reshape(B, T, C).astype(x.dtype)

    return forward


def multi_head_attention(x, wq, wk, wv, wp, bp):
    """One-off convenience wrapper; prefer make_multi_head_attention for repeated calls."""
    return make_multi_head_attention(wq, wk, wv, wp, bp)(x)


def reference(x, wq, wk, wv, wp, bp):
    """Plain-JAX f32 reference mirroring the PyTorch forward (eval mode)."""
    B, T, C = x.shape
    H = wq.shape[0]
    outs = []
    for h in range(H):
        q = x @ wq[h]
        k = x @ wk[h]
        v = x @ wv[h]
        wei = jnp.einsum("btd,bsd->bts", q, k) * (C ** -0.5)
        row = jnp.arange(T)[:, None]
        col = jnp.arange(T)[None, :]
        wei = jnp.where(col <= row, wei, -jnp.inf)
        wei = jax.nn.softmax(wei, axis=-1)
        outs.append(jnp.einsum("bts,bsd->btd", wei, v))
    cat = jnp.concatenate(outs, axis=-1)
    return cat @ wp + bp


if __name__ == "__main__":
    key = jax.random.PRNGKey(0)
    kx, kq, kk, kv, kp, kb = jax.random.split(key, 6)

    B, T, C = 2, block_size, n_embd      # (2, 8, 32)
    H, hs = NUM_HEADS, HEAD_SIZE         # 4, 8

    x = jax.random.normal(kx, (B, T, C), dtype=jnp.float32)
    # Deterministic synthetic parameters (PyTorch-Linear-like scale 1/sqrt(fan_in)).
    s = 1.0 / (C ** 0.5)
    wq = jax.random.uniform(kq, (H, C, hs), minval=-s, maxval=s, dtype=jnp.float32)
    wk = jax.random.uniform(kk, (H, C, hs), minval=-s, maxval=s, dtype=jnp.float32)
    wv = jax.random.uniform(kv, (H, C, hs), minval=-s, maxval=s, dtype=jnp.float32)
    wp = jax.random.uniform(kp, (C, C), minval=-s, maxval=s, dtype=jnp.float32)
    bp = jax.random.uniform(kb, (C,), minval=-s, maxval=s, dtype=jnp.float32)

    mha = make_multi_head_attention(wq, wk, wv, wp, bp)   # weights packed once, fn jitted
    out = jax.block_until_ready(mha(x))

    ref = reference(x, wq, wk, wv, wp, bp)
    assert out.shape == (B, T, C)
    # Tolerance: bf16 MXU operands carry ~2^-8 per-operand rounding through three chained
    # matmuls + softmax (observed ~1e-2 absolute worst case at these magnitudes), and the
    # softmax normalization uses the EUP approximate reciprocal (~1e-4 relative).
    # With MXU_DTYPE = jnp.float32 the kernel matches the reference to ~1e-5.
    tol = 3e-2 if MXU_DTYPE == jnp.bfloat16 else 2e-3
    assert jnp.allclose(out, ref, atol=tol, rtol=tol), "mismatch vs JAX reference"

    print("KERNEL_OK")
</pallas_src>

<mosaic_0001>
module attributes {stable_mosaic.version = 11 : i64} {
  func.func @mha_kernel(%arg0: memref<16x32xbf16, #tpu.memory_space<vmem>>, %arg1: memref<32x192xbf16, #tpu.memory_space<vmem>>, %arg2: memref<16x16xf32, #tpu.memory_space<vmem>>, %arg3: memref<1x32xf32, #tpu.memory_space<vmem>>, %arg4: memref<16x32xf32, #tpu.memory_space<vmem>>) attributes {dimension_semantics = [], scalar_prefetch = 0 : i64, scratch_operands = 0 : i64, tpu.core_type = #tpu.core_type<tc>} {
    %c0 = arith.constant 0 : index
    %c0_0 = arith.constant 0 : index
    %0 = vector.load %arg0[%c0, %c0_0] : memref<16x32xbf16, #tpu.memory_space<vmem>>, vector<16x32xbf16>
    %c0_1 = arith.constant 0 : index
    %c0_2 = arith.constant 0 : index
    %1 = vector.load %arg1[%c0_1, %c0_2] : memref<32x192xbf16, #tpu.memory_space<vmem>>, vector<32x192xbf16>
    %cst = arith.constant dense<0.000000e+00> : vector<16x192xf32>
    %2 = tpu.matmul %0, %1, %cst {dimension_numbers = #tpu.dot_dimension_numbers<[1], [0], [0], [1], [0, 0, 1, 1], [], []>} : vector<16x32xbf16>, vector<32x192xbf16>, vector<16x192xf32> -> vector<16x192xf32>
    %c0_3 = arith.constant 0 : index
    %c0_4 = arith.constant 0 : index
    %3 = vector.load %arg2[%c0_3, %c0_4] : memref<16x16xf32, #tpu.memory_space<vmem>>, vector<16x16xf32>
    %c0_5 = arith.constant 0 : index
    %c0_6 = arith.constant 0 : index
    %4 = vector.load %arg3[%c0_5, %c0_6] : memref<1x32xf32, #tpu.memory_space<vmem>>, vector<1x32xf32>
    %5 = vector.shape_cast %4 : vector<1x32xf32> to vector<1x32xf32>
    %6 = vector.broadcast %5 : vector<1x32xf32> to vector<16x32xf32>
    %7 = vector.extract_strided_slice %2 {offsets = [0, 0], sizes = [16, 8], strides = [1, 1]} : vector<16x192xf32> to vector<16x8xf32>
    %8 = arith.truncf %7 : vector<16x8xf32> to vector<16x8xbf16>
    %9 = vector.extract_strided_slice %2 {offsets = [0, 32], sizes = [16, 8], strides = [1, 1]} : vector<16x192xf32> to vector<16x8xf32>
    %10 = arith.truncf %9 : vector<16x8xf32> to vector<16x8xbf16>
    %cst_7 = arith.constant dense<0.000000e+00> : vector<16x16xf32>
    %11 = tpu.matmul %8, %10, %cst_7 {dimension_numbers = #tpu.dot_dimension_numbers<[1], [1], [0], [0], [0, 0, 1, 0], [], []>} : vector<16x8xbf16>, vector<16x8xbf16>, vector<16x16xf32> -> vector<16x16xf32>
    %12 = arith.addf %11, %3 : vector<16x16xf32>
    %cst_8 = arith.constant dense<0xFF800000> : vector<16xf32>
    %13 = vector.multi_reduction <maximumf>, %12, %cst_8 [1] : vector<16x16xf32> to vector<16xf32>
    %14 = vector.shape_cast %13 : vector<16xf32> to vector<16x1xf32>
    %15 = vector.broadcast %14 : vector<16x1xf32> to vector<16x16xf32>
    %16 = arith.subf %12, %15 : vector<16x16xf32>
    %17 = math.exp %16 : vector<16x16xf32>
    %cst_9 = arith.constant dense<0.000000e+00> : vector<16xf32>
    %18 = vector.multi_reduction <add>, %17, %cst_9 [1] : vector<16x16xf32> to vector<16xf32>
    %19 = vector.shape_cast %18 : vector<16xf32> to vector<16x1xf32>
    %20 = tpu.reciprocal %19 {approx = true} : vector<16x1xf32> -> vector<16x1xf32>
    %21 = vector.broadcast %20 : vector<16x1xf32> to vector<16x16xf32>
    %22 = arith.mulf %17, %21 : vector<16x16xf32>
    %23 = vector.extract_strided_slice %2 {offsets = [0, 64], sizes = [16, 32], strides = [1, 1]} : vector<16x192xf32> to vector<16x32xf32>
    %24 = arith.truncf %23 : vector<16x32xf32> to vector<16x32xbf16>
    %25 = arith.truncf %22 : vector<16x16xf32> to vector<16x16xbf16>
    %cst_10 = arith.constant dense<0.000000e+00> : vector<16x32xf32>
    %26 = tpu.matmul %25, %24, %cst_10 {dimension_numbers = #tpu.dot_dimension_numbers<[1], [0], [0], [1], [0, 0, 1, 1], [], []>} : vector<16x16xbf16>, vector<16x32xbf16>, vector<16x32xf32> -> vector<16x32xf32>
    %27 = arith.addf %6, %26 : vector<16x32xf32>
    %28 = vector.extract_strided_slice %2 {offsets = [0, 8], sizes = [16, 8], strides = [1, 1]} : vector<16x192xf32> to vector<16x8xf32>
    %29 = arith.truncf %28 : vector<16x8xf32> to vector<16x8xbf16>
    %30 = vector.extract_strided_slice %2 {offsets = [0, 40], sizes = [16, 8], strides = [1, 1]} : vector<16x192xf32> to vector<16x8xf32>
    %31 = arith.truncf %30 : vector<16x8xf32> to vector<16x8xbf16>
    %cst_11 = arith.constant dense<0.000000e+00> : vector<16x16xf32>
    %32 = tpu.matmul %29, %31, %cst_11 {dimension_numbers = #tpu.dot_dimension_numbers<[1], [1], [0], [0], [0, 0, 1, 0], [], []>} : vector<16x8xbf16>, vector<16x8xbf16>, vector<16x16xf32> -> vector<16x16xf32>
    %33 = arith.addf %32, %3 : vector<16x16xf32>
    %cst_12 = arith.constant dense<0xFF800000> : vector<16xf32>
    %34 = vector.multi_reduction <maximumf>, %33, %cst_12 [1] : vector<16x16xf32> to vector<16xf32>
    %35 = vector.shape_cast %34 : vector<16xf32> to vector<16x1xf32>
    %36 = vector.broadcast %35 : vector<16x1xf32> to vector<16x16xf32>
    %37 = arith.subf %33, %36 : vector<16x16xf32>
    %38 = math.exp %37 : vector<16x16xf32>
    %cst_13 = arith.constant dense<0.000000e+00> : vector<16xf32>
    %39 = vector.multi_reduction <add>, %38, %cst_13 [1] : vector<16x16xf32> to vector<16xf32>
    %40 = vector.shape_cast %39 : vector<16xf32> to vector<16x1xf32>
    %41 = tpu.reciprocal %40 {approx = true} : vector<16x1xf32> -> vector<16x1xf32>
    %42 = vector.broadcast %41 : vector<16x1xf32> to vector<16x16xf32>
    %43 = arith.mulf %38, %42 : vector<16x16xf32>
    %44 = vector.extract_strided_slice %2 {offsets = [0, 96], sizes = [16, 32], strides = [1, 1]} : vector<16x192xf32> to vector<16x32xf32>
    %45 = arith.truncf %44 : vector<16x32xf32> to vector<16x32xbf16>
    %46 = arith.truncf %43 : vector<16x16xf32> to vector<16x16xbf16>
    %cst_14 = arith.constant dense<0.000000e+00> : vector<16x32xf32>
    %47 = tpu.matmul %46, %45, %cst_14 {dimension_numbers = #tpu.dot_dimension_numbers<[1], [0], [0], [1], [0, 0, 1, 1], [], []>} : vector<16x16xbf16>, vector<16x32xbf16>, vector<16x32xf32> -> vector<16x32xf32>
    %48 = arith.addf %27, %47 : vector<16x32xf32>
    %49 = vector.extract_strided_slice %2 {offsets = [0, 16], sizes = [16, 8], strides = [1, 1]} : vector<16x192xf32> to vector<16x8xf32>
    %50 = arith.truncf %49 : vector<16x8xf32> to vector<16x8xbf16>
    %51 = vector.extract_strided_slice %2 {offsets = [0, 48], sizes = [16, 8], strides = [1, 1]} : vector<16x192xf32> to vector<16x8xf32>
    %52 = arith.truncf %51 : vector<16x8xf32> to vector<16x8xbf16>
    %cst_15 = arith.constant dense<0.000000e+00> : vector<16x16xf32>
    %53 = tpu.matmul %50, %52, %cst_15 {dimension_numbers = #tpu.dot_dimension_numbers<[1], [1], [0], [0], [0, 0, 1, 0], [], []>} : vector<16x8xbf16>, vector<16x8xbf16>, vector<16x16xf32> -> vector<16x16xf32>
    %54 = arith.addf %53, %3 : vector<16x16xf32>
    %cst_16 = arith.constant dense<0xFF800000> : vector<16xf32>
    %55 = vector.multi_reduction <maximumf>, %54, %cst_16 [1] : vector<16x16xf32> to vector<16xf32>
    %56 = vector.shape_cast %55 : vector<16xf32> to vector<16x1xf32>
    %57 = vector.broadcast %56 : vector<16x1xf32> to vector<16x16xf32>
    %58 = arith.subf %54, %57 : vector<16x16xf32>
    %59 = math.exp %58 : vector<16x16xf32>
    %cst_17 = arith.constant dense<0.000000e+00> : vector<16xf32>
    %60 = vector.multi_reduction <add>, %59, %cst_17 [1] : vector<16x16xf32> to vector<16xf32>
    %61 = vector.shape_cast %60 : vector<16xf32> to vector<16x1xf32>
    %62 = tpu.reciprocal %61 {approx = true} : vector<16x1xf32> -> vector<16x1xf32>
    %63 = vector.broadcast %62 : vector<16x1xf32> to vector<16x16xf32>
    %64 = arith.mulf %59, %63 : vector<16x16xf32>
    %65 = vector.extract_strided_slice %2 {offsets = [0, 128], sizes = [16, 32], strides = [1, 1]} : vector<16x192xf32> to vector<16x32xf32>
    %66 = arith.truncf %65 : vector<16x32xf32> to vector<16x32xbf16>
    %67 = arith.truncf %64 : vector<16x16xf32> to vector<16x16xbf16>
    %cst_18 = arith.constant dense<0.000000e+00> : vector<16x32xf32>
    %68 = tpu.matmul %67, %66, %cst_18 {dimension_numbers = #tpu.dot_dimension_numbers<[1], [0], [0], [1], [0, 0, 1, 1], [], []>} : vector<16x16xbf16>, vector<16x32xbf16>, vector<16x32xf32> -> vector<16x32xf32>
    %69 = arith.addf %48, %68 : vector<16x32xf32>
    %70 = vector.extract_strided_slice %2 {offsets = [0, 24], sizes = [16, 8], strides = [1, 1]} : vector<16x192xf32> to vector<16x8xf32>
    %71 = arith.truncf %70 : vector<16x8xf32> to vector<16x8xbf16>
    %72 = vector.extract_strided_slice %2 {offsets = [0, 56], sizes = [16, 8], strides = [1, 1]} : vector<16x192xf32> to vector<16x8xf32>
    %73 = arith.truncf %72 : vector<16x8xf32> to vector<16x8xbf16>
    %cst_19 = arith.constant dense<0.000000e+00> : vector<16x16xf32>
    %74 = tpu.matmul %71, %73, %cst_19 {dimension_numbers = #tpu.dot_dimension_numbers<[1], [1], [0], [0], [0, 0, 1, 0], [], []>} : vector<16x8xbf16>, vector<16x8xbf16>, vector<16x16xf32> -> vector<16x16xf32>
    %75 = arith.addf %74, %3 : vector<16x16xf32>
    %cst_20 = arith.constant dense<0xFF800000> : vector<16xf32>
    %76 = vector.multi_reduction <maximumf>, %75, %cst_20 [1] : vector<16x16xf32> to vector<16xf32>
    %77 = vector.shape_cast %76 : vector<16xf32> to vector<16x1xf32>
    %78 = vector.broadcast %77 : vector<16x1xf32> to vector<16x16xf32>
    %79 = arith.subf %75, %78 : vector<16x16xf32>
    %80 = math.exp %79 : vector<16x16xf32>
    %cst_21 = arith.constant dense<0.000000e+00> : vector<16xf32>
    %81 = vector.multi_reduction <add>, %80, %cst_21 [1] : vector<16x16xf32> to vector<16xf32>
    %82 = vector.shape_cast %81 : vector<16xf32> to vector<16x1xf32>
    %83 = tpu.reciprocal %82 {approx = true} : vector<16x1xf32> -> vector<16x1xf32>
    %84 = vector.broadcast %83 : vector<16x1xf32> to vector<16x16xf32>
    %85 = arith.mulf %80, %84 : vector<16x16xf32>
    %86 = vector.extract_strided_slice %2 {offsets = [0, 160], sizes = [16, 32], strides = [1, 1]} : vector<16x192xf32> to vector<16x32xf32>
    %87 = arith.truncf %86 : vector<16x32xf32> to vector<16x32xbf16>
    %88 = arith.truncf %85 : vector<16x16xf32> to vector<16x16xbf16>
    %cst_22 = arith.constant dense<0.000000e+00> : vector<16x32xf32>
    %89 = tpu.matmul %88, %87, %cst_22 {dimension_numbers = #tpu.dot_dimension_numbers<[1], [0], [0], [1], [0, 0, 1, 1], [], []>} : vector<16x16xbf16>, vector<16x32xbf16>, vector<16x32xf32> -> vector<16x32xf32>
    %90 = arith.addf %69, %89 : vector<16x32xf32>
    %c0_23 = arith.constant 0 : index
    %c0_24 = arith.constant 0 : index
    %91 = vector.load %arg4[%c0_23, %c0_24] : memref<16x32xf32, #tpu.memory_space<vmem>>, vector<16x32xf32>
    tpu.vector_store %arg4[%c0_23, %c0_24], %90 {strides = array<i32>} : memref<16x32xf32, #tpu.memory_space<vmem>>, vector<16x32xf32>,
    return
  }
}

</mosaic_0001>

<llo_original>
// kernel: forward.1
$region0: #{forward.1}
  #allocation0 [shape = 'u32[]', space=smem, size = 0x4, offset = 0x4, fixed_abs, tag = 'smem constant byte address 0x4 - core index']
  #allocation1 [shape = 'u32[144,128]{1,0:T(1,128)}', space=vmem, size = 0x12000, scoped, tag = 'internal scratch']
  %s0 = inlined_call_operand.vmem [shape: bf16[16,32], index: 0, kind: input, shape index: {}]
  %s1 = inlined_call_operand.vmem [shape: bf16[32,192], index: 1, kind: input, shape index: {}]
  %s2 = inlined_call_operand.vmem [shape: f32[16,16], index: 2, kind: input, shape index: {}]
  %s3 = inlined_call_operand.vmem [shape: f32[1,32], index: 3, kind: input, shape index: {}]
  %s4 = inlined_call_operand.hbm [shape: f32[16,32], index: 4, kind: output, shape index: {}]
  %s5 = sld [smem:[#allocation0]]
  $region26: #{forward.1} parent=0
    _
  %s7 = ssub.s32 1, %s5
  %s8 = scalar_select 0, %s7, %s5
  $region1: #{forward.1} parent=0
    #allocation2 [shape = 'u8[8192]{0}', space=vmem, size = 0x2000, scoped, tag = 'output window, operand 0, single buffered']
    #allocation3 [shape = 's32[1]{0}', space=sflag, size = 0x4, scoped, tag = 'scoped memory for forward.1']
    %9 = vsyncpa [#allocation3], 0
    // Predicated region
    $region2: #{forward.1} parent=1 // pred_check
      _
    $region3: #{forward.1} parent=1 // pred_check_branch
      %11 = sbr.rel (0) target = $region5
    $region4: #{forward.1} parent=1 // pred_region
      _
    $region5: #{forward.1} parent=1 // pred_fallthru
      _
    // Predicated region
    $region6: #{forward.1} parent=1 // pred_check
      _
    $region7: #{forward.1} parent=1 // pred_check_branch
      %13 = sbr.rel (0) target = $region9
    $region8: #{forward.1} parent=1 // pred_region
      _
    $region9: #{forward.1} parent=1 // pred_fallthru
      _
    // Predicated region
    $region10: #{forward.1} parent=1 // pred_check
      _
    $region11: #{forward.1} parent=1 // pred_check_branch
      %15 = sbr.rel (0) target = $region13
    $region12: #{forward.1} parent=1 // pred_region
      _
    $region13: #{forward.1} parent=1 // pred_fallthru
      _
    // Predicated region
    $region14: #{forward.1} parent=1 // pred_check
      _
    $region15: #{forward.1} parent=1 // pred_check_branch
      %17 = sbr.rel (0) target = $region17
    $region16: #{forward.1} parent=1 // pred_region
      _
    $region17: #{forward.1} parent=1 // pred_fallthru
      _
    %v19 = vld [vmem:[%s0] sm:$0xf]
    %v20 = vld [vmem:[%s0 + $0x4] sm:$0xf]
    %v21 = vld [vmem:[%s1] sm:$0xff]
    %v22 = vld [vmem:[%s1 + $0x8] sm:$0xff]
    %v23 = vld [vmem:[%s1 + $0x10] sm:$0xff]
    %v24 = vld [vmem:[%s1 + $0x18] sm:$0xff]
    %v27 = vunpack.c.l.b16 %v19
    %v28 = vunpack.c.l.b16 %v20
    %v29 = vpack.c.b16 %v28, %v27
    %v34 = vunpack.c.l.b16 %v21
    %v35 = vunpack.c.h.b16 %v21
    %v36 = vunpack.c.l.b16 %v22
    %v37 = vunpack.c.h.b16 %v22
    %v38 = vunpack.c.l.b16 %v23
    %v39 = vunpack.c.h.b16 %v23
    %v40 = vunpack.c.l.b16 %v24
    %v41 = vunpack.c.h.b16 %v24
    %v42 = vpack.c.b16 %v36, %v34
    %v43 = vpack.c.b16 %v37, %v35
    %v44 = vpack.c.b16 %v40, %v38
    %v45 = vpack.c.b16 %v41, %v39
    %vm50 = vcmask 261120
    %v52 = vsel %vm50, %v29, 0
    %54 = vmatprep.subr.bf16.mxu0 %v43
    %55 = vmatpush1.bf16.msra.mxu0 %v42
    %56 = vmatprep.subr.bf16.mxu0 %v45
    %57 = vmatpush1.bf16.msra.mxu0 %v44
    %58 = vmatprep.subr.bf16.mxu0 0
    %59 = vmatpush1.bf16.msra.mxu0 0
    %60 = vmatprep.subr.bf16.mxu0 0
    %61 = vmatpush1.bf16.msra.mxu0 0
    %62 = vmatprep.subr.bf16.mxu0 0
    %63 = vmatpush1.bf16.msra.mxu0 0
    %64 = vmatprep.subr.bf16.mxu0 0
    %65 = vmatpush1.bf16.msra.mxu0 0
    %66 = vmatprep.subr.bf16.mxu0 0
    %67 = vmatpush1.bf16.msra.mxu0 0
    %68 = vmatprep.subr.bf16.mxu0 0
    %69 = vmatpush1.bf16.msra.mxu0 0
    %70 = vmatprep.subr.bf16.mxu0 0
    %71 = vmatpush1.bf16.msra.mxu0 0
    %72 = vmatprep.subr.bf16.mxu0 0
    %73 = vmatpush1.bf16.msra.mxu0 0
    %74 = vmatprep.subr.bf16.mxu0 0
    %75 = vmatpush1.bf16.msra.mxu0 0
    %76 = vmatprep.subr.bf16.mxu0 0
    %77 = vmatpush1.bf16.msra.mxu0 0
    %78 = vmatprep.subr.bf16.mxu0 0
    %79 = vmatpush1.bf16.msra.mxu0 0
    %80 = vmatprep.subr.bf16.mxu0 0
    %81 = vmatpush1.bf16.msra.mxu0 0
    %82 = vmatprep.subr.bf16.mxu0 0
    %83 = vmatpush1.bf16.msra.mxu0 0
    %84 = vmatprep.subr.bf16.mxu0 0
    %85 = vmatpush1.bf16.msra.mxu0 0
    %86 = vmatprep.mubr.bf16.mxu0 0
    %87 = vmatmul.mubr.bf16.gmra.mrb[0].mxu0 %v52
    %v88 = vpop.f32.mrb[0].mxu0
    %v89 = vadd.f32 0.0, %v88
    %v90 = vpop.f32.mrb[0].mxu0
    %v91 = vadd.f32 0.0, %v90
    %v92 = vpop.f32.mrb[0].mxu0
    %v93 = vadd.f32 0.0, %v92
    %v94 = vpop.f32.mrb[0].mxu0
    %v95 = vadd.f32 0.0, %v94
    %96 = vdwg.mxu0
    %v97 = vld [vmem:[%s2] sm:$0xff]
    %v98 = vld [vmem:[%s2 + $0x8] sm:$0xff]
    %v99 = vld [vmem:[%s3] sm:$0x1]
    %v101 = vlaneseq
    %v102 = vshrl.u32 %v101, 7
    %v103 = vsub.s32 0, %v102
    %v104 = vrot.slane %v99, %v103
    %v106 = vpack.c.bf16 %v93, %v89
    %108 = vrot.lane.b32.xlu0 %v106, 96
    %v109 = vpop.permute.xlu0 %108
    %vm110 = vcmask 64512
    %v112 = vsel %vm110, %v106, 0
    %v115 = vsel %vm110, %v109, 0
    %117 = vmatprep.subr.bf16.mxu0 0
    %118 = vmatpush1.bf16.xpose.msra.mxu0 %v115
    %119 = vmatprep.subr.bf16.mxu0 0
    %120 = vmatpush1.bf16.xpose.msra.mxu0 0
    %121 = vmatprep.subr.bf16.mxu0 0
    %122 = vmatpush1.bf16.xpose.msra.mxu0 0
    %123 = vmatprep.subr.bf16.mxu0 0
    %124 = vmatpush1.bf16.xpose.msra.mxu0 0
    %125 = vmatprep.subr.bf16.mxu0 0
    %126 = vmatpush1.bf16.xpose.msra.mxu0 0
    %127 = vmatprep.subr.bf16.mxu0 0
    %128 = vmatpush1.bf16.xpose.msra.mxu0 0
    %129 = vmatprep.subr.bf16.mxu0 0
    %130 = vmatpush1.bf16.xpose.msra.mxu0 0
    %131 = vmatprep.subr.bf16.mxu0 0
    %132 = vmatpush1.bf16.xpose.msra.mxu0 0
    %133 = vmatprep.subr.bf16.mxu0 0
    %134 = vmatpush1.bf16.xpose.msra.mxu0 0
    %135 = vmatprep.subr.bf16.mxu0 0
    %136 = vmatpush1.bf16.xpose.msra.mxu0 0
    %137 = vmatprep.subr.bf16.mxu0 0
    %138 = vmatpush1.bf16.xpose.msra.mxu0 0
    %139 = vmatprep.subr.bf16.mxu0 0
    %140 = vmatpush1.bf16.xpose.msra.mxu0 0
    %141 = vmatprep.subr.bf16.mxu0 0
    %142 = vmatpush1.bf16.xpose.msra.mxu0 0
    %143 = vmatprep.subr.bf16.mxu0 0
    %144 = vmatpush1.bf16.xpose.msra.mxu0 0
    %145 = vmatprep.subr.bf16.mxu0 0
    %146 = vmatpush1.bf16.xpose.msra.mxu0 0
    %147 = vmatprep.subr.bf16.mxu0 0
    %148 = vmatpush1.bf16.xpose.msra.mxu0 0
    %149 = vmatprep.mubr.bf16.mxu0 0
    %150 = vmatmul.mubr.bf16.gmra.mrb[0].mxu0 %v112
    %v151 = vpop.f32.mrb[0].mxu0
    %v152 = vadd.f32 %v97, %v151
    %v153 = vpop.f32.mrb[0].mxu0
    %v154 = vpop.f32.mrb[0].mxu0
    %v155 = vadd.f32 %v98, %v154
    %v156 = vpop.f32.mrb[0].mxu0
    %157 = vdwg.mxu0
    %vm158 = vcmask 130048
    %v159 = vsel %vm158, %v152, -inf
    %160 = vmax.xlane.f32.xlu0 %v159
    %v161 = vpop.xlane.xlu0 %160
    %v162 = vsel %vm158, %v155, -inf
    %163 = vmax.xlane.f32.xlu0 %v162
    %v164 = vpop.xlane.xlu0 %163
    %v165 = vsub.f32 %v152, %v161
    %v166 = vsub.f32 %v155, %v164
    %v167 = vmul.f32 %v165, 1.442695
    %v168 = vpow.pop %v167
    %v169 = vmul.f32 %v166, 1.442695
    %v170 = vpow.pop %v169
    %v171 = vsel %vm158, %v168, 0.0
    %172 = vadd.xlane.f32.xlu0 %v171
    %v173 = vpop.xlane.xlu0 %172
    %v174 = vsel %vm158, %v170, 0.0
    %175 = vadd.xlane.f32.xlu0 %v174
    %v176 = vpop.xlane.xlu0 %175
    %v177 = vrcp.pop %v173
    %v178 = vrcp.pop %v176
    %v179 = vmul.f32 %v168, %v177
    %v180 = vmul.f32 %v170, %v178
    %v181 = vpack.c.bf16 %v180, %v179
    %182 = vrot.lane.b32.xlu0 %v106, 64
    %v183 = vpop.permute.xlu0 %182
    %v186 = vsel %vm158, %v181, 0
    %188 = vmatprep.subr.bf16.mxu0 0
    %189 = vmatpush1.bf16.msra.mxu0 %v183
    %190 = vmatprep.subr.bf16.mxu0 0
    %191 = vmatpush1.bf16.msra.mxu0 0
    %192 = vmatprep.subr.bf16.mxu0 0
    %193 = vmatpush1.bf16.msra.mxu0 0
    %194 = vmatprep.subr.bf16.mxu0 0
    %195 = vmatpush1.bf16.msra.mxu0 0
    %196 = vmatprep.subr.bf16.mxu0 0
    %197 = vmatpush1.bf16.msra.mxu0 0
    %198 = vmatprep.subr.bf16.mxu0 0
    %199 = vmatpush1.bf16.msra.mxu0 0
    %200 = vmatprep.subr.bf16.mxu0 0
    %201 = vmatpush1.bf16.msra.mxu0 0
    %202 = vmatprep.subr.bf16.mxu0 0
    %203 = vmatpush1.bf16.msra.mxu0 0
    %204 = vmatprep.subr.bf16.mxu0 0
    %205 = vmatpush1.bf16.msra.mxu0 0
    %206 = vmatprep.subr.bf16.mxu0 0
    %207 = vmatpush1.bf16.msra.mxu0 0
    %208 = vmatprep.subr.bf16.mxu0 0
    %209 = vmatpush1.bf16.msra.mxu0 0
    %210 = vmatprep.subr.bf16.mxu0 0
    %211 = vmatpush1.bf16.msra.mxu0 0
    %212 = vmatprep.subr.bf16.mxu0 0
    %213 = vmatpush1.bf16.msra.mxu0 0
    %214 = vmatprep.subr.bf16.mxu0 0
    %215 = vmatpush1.bf16.msra.mxu0 0
    %216 = vmatprep.subr.bf16.mxu0 0
    %217 = vmatpush1.bf16.msra.mxu0 0
    %218 = vmatprep.subr.bf16.mxu0 0
    %219 = vmatpush1.bf16.msra.mxu0 0
    %220 = vmatprep.mubr.bf16.mxu0 0
    %221 = vmatmul.mubr.bf16.gmra.mrb[0].mxu0 %v186
    %v222 = vpop.f32.mrb[0].mxu0
    %v223 = vadd.f32 0.0, %v222
    %v224 = vpop.f32.mrb[0].mxu0
    %v225 = vpop.f32.mrb[0].mxu0
    %v226 = vadd.f32 0.0, %v225
    %v227 = vpop.f32.mrb[0].mxu0
    %228 = vdwg.mxu0
    %v229 = vadd.f32 %v104, %v223
    %v230 = vadd.f32 %v104, %v226
    %231 = vrot.lane.b32.xlu0 %v106, 120
    %v232 = vpop.permute.xlu0 %231
    %233 = vrot.lane.b32.xlu0 %v106, 88
    %v234 = vpop.permute.xlu0 %233
    %v236 = vsel %vm110, %v232, 0
    %v239 = vsel %vm110, %v234, 0
    %241 = vmatprep.subr.bf16.mxu0 0
    %242 = vmatpush1.bf16.xpose.msra.mxu0 %v239
    %243 = vmatprep.subr.bf16.mxu0 0
    %244 = vmatpush1.bf16.xpose.msra.mxu0 0
    %245 = vmatprep.subr.bf16.mxu0 0
    %246 = vmatpush1.bf16.xpose.msra.mxu0 0
    %247 = vmatprep.subr.bf16.mxu0 0
    %248 = vmatpush1.bf16.xpose.msra.mxu0 0
    %249 = vmatprep.subr.bf16.mxu0 0
    %250 = vmatpush1.bf16.xpose.msra.mxu0 0
    %251 = vmatprep.subr.bf16.mxu0 0
    %252 = vmatpush1.bf16.xpose.msra.mxu0 0
    %253 = vmatprep.subr.bf16.mxu0 0
    %254 = vmatpush1.bf16.xpose.msra.mxu0 0
    %255 = vmatprep.subr.bf16.mxu0 0
    %256 = vmatpush1.bf16.xpose.msra.mxu0 0
    %257 = vmatprep.subr.bf16.mxu0 0
    %258 = vmatpush1.bf16.xpose.msra.mxu0 0
    %259 = vmatprep.subr.bf16.mxu0 0
    %260 = vmatpush1.bf16.xpose.msra.mxu0 0
    %261 = vmatprep.subr.bf16.mxu0 0
    %262 = vmatpush1.bf16.xpose.msra.mxu0 0
    %263 = vmatprep.subr.bf16.mxu0 0
    %264 = vmatpush1.bf16.xpose.msra.mxu0 0
    %265 = vmatprep.subr.bf16.mxu0 0
    %266 = vmatpush1.bf16.xpose.msra.mxu0 0
    %267 = vmatprep.subr.bf16.mxu0 0
    %268 = vmatpush1.bf16.xpose.msra.mxu0 0
    %269 = vmatprep.subr.bf16.mxu0 0
    %270 = vmatpush1.bf16.xpose.msra.mxu0 0
    %271 = vmatprep.subr.bf16.mxu0 0
    %272 = vmatpush1.bf16.xpose.msra.mxu0 0
    %273 = vmatprep.mubr.bf16.mxu0 0
    %274 = vmatmul.mubr.bf16.gmra.mrb[0].mxu0 %v236
    %v275 = vpop.f32.mrb[0].mxu0
    %v276 = vadd.f32 %v97, %v275
    %v277 = vpop.f32.mrb[0].mxu0
    %v278 = vpop.f32.mrb[0].mxu0
    %v279 = vadd.f32 %v98, %v278
    %v280 = vpop.f32.mrb[0].mxu0
    %281 = vdwg.mxu0
    %v282 = vsel %vm158, %v276, -inf
    %283 = vmax.xlane.f32.xlu0 %v282
    %v284 = vpop.xlane.xlu0 %283
    %v285 = vsel %vm158, %v279, -inf
    %286 = vmax.xlane.f32.xlu0 %v285
    %v287 = vpop.xlane.xlu0 %286
    %v288 = vsub.f32 %v276, %v284
    %v289 = vsub.f32 %v279, %v287
    %v290 = vmul.f32 %v288, 1.442695
    %v291 = vpow.pop %v290
    %v292 = vmul.f32 %v289, 1.442695
    %v293 = vpow.pop %v292
    %v294 = vsel %vm158, %v291, 0.0
    %295 = vadd.xlane.f32.xlu0 %v294
    %v296 = vpop.xlane.xlu0 %295
    %v297 = vsel %vm158, %v293, 0.0
    %298 = vadd.xlane.f32.xlu0 %v297
    %v299 = vpop.xlane.xlu0 %298
    %v300 = vrcp.pop %v296
    %v301 = vrcp.pop %v299
    %v302 = vmul.f32 %v291, %v300
    %v303 = vmul.f32 %v293, %v301
    %v304 = vpack.c.bf16 %v303, %v302
    %305 = vrot.lane.b32.xlu0 %v106, 32
    %v306 = vpop.permute.xlu0 %305
    %v309 = vsel %vm158, %v304, 0
    %311 = vmatprep.subr.bf16.mxu0 0
    %312 = vmatpush1.bf16.msra.mxu0 %v306
    %313 = vmatprep.subr.bf16.mxu0 0
    %314 = vmatpush1.bf16.msra.mxu0 0
    %315 = vmatprep.subr.bf16.mxu0 0
    %316 = vmatpush1.bf16.msra.mxu0 0
    %317 = vmatprep.subr.bf16.mxu0 0
    %318 = vmatpush1.bf16.msra.mxu0 0
    %319 = vmatprep.subr.bf16.mxu0 0
    %320 = vmatpush1.bf16.msra.mxu0 0
    %321 = vmatprep.subr.bf16.mxu0 0
    %322 = vmatpush1.bf16.msra.mxu0 0
    %323 = vmatprep.subr.bf16.mxu0 0
    %324 = vmatpush1.bf16.msra.mxu0 0
    %325 = vmatprep.subr.bf16.mxu0 0
    %326 = vmatpush1.bf16.msra.mxu0 0
    %327 = vmatprep.subr.bf16.mxu0 0
    %328 = vmatpush1.bf16.msra.mxu0 0
    %329 = vmatprep.subr.bf16.mxu0 0
    %330 = vmatpush1.bf16.msra.mxu0 0
    %331 = vmatprep.subr.bf16.mxu0 0
    %332 = vmatpush1.bf16.msra.mxu0 0
    %333 = vmatprep.subr.bf16.mxu0 0
    %334 = vmatpush1.bf16.msra.mxu0 0
    %335 = vmatprep.subr.bf16.mxu0 0
    %336 = vmatpush1.bf16.msra.mxu0 0
    %337 = vmatprep.subr.bf16.mxu0 0
    %338 = vmatpush1.bf16.msra.mxu0 0
    %339 = vmatprep.subr.bf16.mxu0 0
    %340 = vmatpush1.bf16.msra.mxu0 0
    %341 = vmatprep.subr.bf16.mxu0 0
    %342 = vmatpush1.bf16.msra.mxu0 0
    %343 = vmatprep.mubr.bf16.mxu0 0
    %344 = vmatmul.mubr.bf16.gmra.mrb[0].mxu0 %v309
    %v345 = vpop.f32.mrb[0].mxu0
    %v346 = vadd.f32 0.0, %v345
    %v347 = vpop.f32.mrb[0].mxu0
    %v348 = vpop.f32.mrb[0].mxu0
    %v349 = vadd.f32 0.0, %v348
    %v350 = vpop.f32.mrb[0].mxu0
    %351 = vdwg.mxu0
    %v352 = vadd.f32 %v229, %v346
    %v353 = vadd.f32 %v230, %v349
    %354 = vrot.lane.b32.xlu0 %v106, 112
    %v355 = vpop.permute.xlu0 %354
    %356 = vrot.lane.b32.xlu0 %v106, 80
    %v357 = vpop.permute.xlu0 %356
    %v359 = vsel %vm110, %v355, 0
    %v362 = vsel %vm110, %v357, 0
    %364 = vmatprep.subr.bf16.mxu0 0
    %365 = vmatpush1.bf16.xpose.msra.mxu0 %v362
    %366 = vmatprep.subr.bf16.mxu0 0
    %367 = vmatpush1.bf16.xpose.msra.mxu0 0
    %368 = vmatprep.subr.bf16.mxu0 0
    %369 = vmatpush1.bf16.xpose.msra.mxu0 0
    %370 = vmatprep.subr.bf16.mxu0 0
    %371 = vmatpush1.bf16.xpose.msra.mxu0 0
    %372 = vmatprep.subr.bf16.mxu0 0
    %373 = vmatpush1.bf16.xpose.msra.mxu0 0
    %374 = vmatprep.subr.bf16.mxu0 0
    %375 = vmatpush1.bf16.xpose.msra.mxu0 0
    %376 = vmatprep.subr.bf16.mxu0 0
    %377 = vmatpush1.bf16.xpose.msra.mxu0 0
    %378 = vmatprep.subr.bf16.mxu0 0
    %379 = vmatpush1.bf16.xpose.msra.mxu0 0
    %380 = vmatprep.subr.bf16.mxu0 0
    %381 = vmatpush1.bf16.xpose.msra.mxu0 0
    %382 = vmatprep.subr.bf16.mxu0 0
    %383 = vmatpush1.bf16.xpose.msra.mxu0 0
    %384 = vmatprep.subr.bf16.mxu0 0
    %385 = vmatpush1.bf16.xpose.msra.mxu0 0
    %386 = vmatprep.subr.bf16.mxu0 0
    %387 = vmatpush1.bf16.xpose.msra.mxu0 0
    %388 = vmatprep.subr.bf16.mxu0 0
    %389 = vmatpush1.bf16.xpose.msra.mxu0 0
    %390 = vmatprep.subr.bf16.mxu0 0
    %391 = vmatpush1.bf16.xpose.msra.mxu0 0
    %392 = vmatprep.subr.bf16.mxu0 0
    %393 = vmatpush1.bf16.xpose.msra.mxu0 0
    %394 = vmatprep.subr.bf16.mxu0 0
    %395 = vmatpush1.bf16.xpose.msra.mxu0 0
    %396 = vmatprep.mubr.bf16.mxu0 0
    %397 = vmatmul.mubr.bf16.gmra.mrb[0].mxu0 %v359
    %v398 = vpop.f32.mrb[0].mxu0
    %v399 = vadd.f32 %v97, %v398
    %v400 = vpop.f32.mrb[0].mxu0
    %v401 = vpop.f32.mrb[0].mxu0
    %v402 = vadd.f32 %v98, %v401
    %v403 = vpop.f32.mrb[0].mxu0
    %404 = vdwg.mxu0
    %v405 = vsel %vm158, %v399, -inf
    %406 = vmax.xlane.f32.xlu0 %v405
    %v407 = vpop.xlane.xlu0 %406
    %v408 = vsel %vm158, %v402, -inf
    %409 = vmax.xlane.f32.xlu0 %v408
    %v410 = vpop.xlane.xlu0 %409
    %v411 = vsub.f32 %v399, %v407
    %v412 = vsub.f32 %v402, %v410
    %v413 = vmul.f32 %v411, 1.442695
    %v414 = vpow.pop %v413
    %v415 = vmul.f32 %v412, 1.442695
    %v416 = vpow.pop %v415
    %v417 = vsel %vm158, %v414, 0.0
    %418 = vadd.xlane.f32.xlu0 %v417
    %v419 = vpop.xlane.xlu0 %418
    %v420 = vsel %vm158, %v416, 0.0
    %421 = vadd.xlane.f32.xlu0 %v420
    %v422 = vpop.xlane.xlu0 %421
    %v423 = vrcp.pop %v419
    %v424 = vrcp.pop %v422
    %v425 = vmul.f32 %v414, %v423
    %v426 = vmul.f32 %v416, %v424
    %v427 = vpack.c.bf16 %v95, %v91
    %v428 = vpack.c.bf16 %v426, %v425
    %v430 = vsel %vm158, %v428, 0
    %432 = vmatprep.subr.bf16.mxu0 0
    %433 = vmatpush1.bf16.msra.mxu0 %v427
    %434 = vmatprep.subr.bf16.mxu0 0
    %435 = vmatpush1.bf16.msra.mxu0 0
    %436 = vmatprep.subr.bf16.mxu0 0
    %437 = vmatpush1.bf16.msra.mxu0 0
    %438 = vmatprep.subr.bf16.mxu0 0
    %439 = vmatpush1.bf16.msra.mxu0 0
    %440 = vmatprep.subr.bf16.mxu0 0
    %441 = vmatpush1.bf16.msra.mxu0 0
    %442 = vmatprep.subr.bf16.mxu0 0
    %443 = vmatpush1.bf16.msra.mxu0 0
    %444 = vmatprep.subr.bf16.mxu0 0
    %445 = vmatpush1.bf16.msra.mxu0 0
    %446 = vmatprep.subr.bf16.mxu0 0
    %447 = vmatpush1.bf16.msra.mxu0 0
    %448 = vmatprep.subr.bf16.mxu0 0
    %449 = vmatpush1.bf16.msra.mxu0 0
    %450 = vmatprep.subr.bf16.mxu0 0
    %451 = vmatpush1.bf16.msra.mxu0 0
    %452 = vmatprep.subr.bf16.mxu0 0
    %453 = vmatpush1.bf16.msra.mxu0 0
    %454 = vmatprep.subr.bf16.mxu0 0
    %455 = vmatpush1.bf16.msra.mxu0 0
    %456 = vmatprep.subr.bf16.mxu0 0
    %457 = vmatpush1.bf16.msra.mxu0 0
    %458 = vmatprep.subr.bf16.mxu0 0
    %459 = vmatpush1.bf16.msra.mxu0 0
    %460 = vmatprep.subr.bf16.mxu0 0
    %461 = vmatpush1.bf16.msra.mxu0 0
    %462 = vmatprep.subr.bf16.mxu0 0
    %463 = vmatpush1.bf16.msra.mxu0 0
    %464 = vmatprep.mubr.bf16.mxu0 0
    %465 = vmatmul.mubr.bf16.gmra.mrb[0].mxu0 %v430
    %v466 = vpop.f32.mrb[0].mxu0
    %v467 = vadd.f32 0.0, %v466
    %v468 = vpop.f32.mrb[0].mxu0
    %v469 = vpop.f32.mrb[0].mxu0
    %v470 = vadd.f32 0.0, %v469
    %v471 = vpop.f32.mrb[0].mxu0
    %472 = vdwg.mxu0
    %v473 = vadd.f32 %v352, %v467
    %v474 = vadd.f32 %v353, %v470
    %475 = vrot.lane.b32.xlu0 %v106, 104
    %v476 = vpop.permute.xlu0 %475
    %477 = vrot.lane.b32.xlu0 %v106, 72
    %v478 = vpop.permute.xlu0 %477
    %v480 = vsel %vm110, %v476, 0
    %v483 = vsel %vm110, %v478, 0
    %485 = vmatprep.subr.bf16.mxu0 0
    %486 = vmatpush1.bf16.xpose.msra.mxu0 %v483
    %487 = vmatprep.subr.bf16.mxu0 0
    %488 = vmatpush1.bf16.xpose.msra.mxu0 0
    %489 = vmatprep.subr.bf16.mxu0 0
    %490 = vmatpush1.bf16.xpose.msra.mxu0 0
    %491 = vmatprep.subr.bf16.mxu0 0
    %492 = vmatpush1.bf16.xpose.msra.mxu0 0
    %493 = vmatprep.subr.bf16.mxu0 0
    %494 = vmatpush1.bf16.xpose.msra.mxu0 0
    %495 = vmatprep.subr.bf16.mxu0 0
    %496 = vmatpush1.bf16.xpose.msra.mxu0 0
    %497 = vmatprep.subr.bf16.mxu0 0
    %498 = vmatpush1.bf16.xpose.msra.mxu0 0
    %499 = vmatprep.subr.bf16.mxu0 0
    %500 = vmatpush1.bf16.xpose.msra.mxu0 0
    %501 = vmatprep.subr.bf16.mxu0 0
    %502 = vmatpush1.bf16.xpose.msra.mxu0 0
    %503 = vmatprep.subr.bf16.mxu0 0
    %504 = vmatpush1.bf16.xpose.msra.mxu0 0
    %505 = vmatprep.subr.bf16.mxu0 0
    %506 = vmatpush1.bf16.xpose.msra.mxu0 0
    %507 = vmatprep.subr.bf16.mxu0 0
    %508 = vmatpush1.bf16.xpose.msra.mxu0 0
    %509 = vmatprep.subr.bf16.mxu0 0
    %510 = vmatpush1.bf16.xpose.msra.mxu0 0
    %511 = vmatprep.subr.bf16.mxu0 0
    %512 = vmatpush1.bf16.xpose.msra.mxu0 0
    %513 = vmatprep.subr.bf16.mxu0 0
    %514 = vmatpush1.bf16.xpose.msra.mxu0 0
    %515 = vmatprep.subr.bf16.mxu0 0
    %516 = vmatpush1.bf16.xpose.msra.mxu0 0
    %517 = vmatprep.mubr.bf16.mxu0 0
    %518 = vmatmul.mubr.bf16.gmra.mrb[0].mxu0 %v480
    %v519 = vpop.f32.mrb[0].mxu0
    %v520 = vadd.f32 %v97, %v519
    %v521 = vpop.f32.mrb[0].mxu0
    %v522 = vpop.f32.mrb[0].mxu0
    %v523 = vadd.f32 %v98, %v522
    %v524 = vpop.f32.mrb[0].mxu0
    %525 = vdwg.mxu0
    %v526 = vsel %vm158, %v520, -inf
    %527 = vmax.xlane.f32.xlu0 %v526
    %v528 = vpop.xlane.xlu0 %527
    %v529 = vsel %vm158, %v523, -inf
    %530 = vmax.xlane.f32.xlu0 %v529
    %v531 = vpop.xlane.xlu0 %530
    %v532 = vsub.f32 %v520, %v528
    %v533 = vsub.f32 %v523, %v531
    %v534 = vmul.f32 %v532, 1.442695
    %v535 = vpow.pop %v534
    %v536 = vmul.f32 %v533, 1.442695
    %v537 = vpow.pop %v536
    %v538 = vsel %vm158, %v535, 0.0
    %539 = vadd.xlane.f32.xlu0 %v538
    %v540 = vpop.xlane.xlu0 %539
    %v541 = vsel %vm158, %v537, 0.0
    %542 = vadd.xlane.f32.xlu0 %v541
    %v543 = vpop.xlane.xlu0 %542
    %v544 = vrcp.pop %v540
    %v545 = vrcp.pop %v543
    %v546 = vmul.f32 %v535, %v544
    %v547 = vmul.f32 %v537, %v545
    %v548 = vpack.c.bf16 %v547, %v546
    %550 = vrot.lane.b32.xlu0 %v427, 96
    %v551 = vpop.permute.xlu0 %550
    %v554 = vsel %vm158, %v548, 0
    %556 = vmatprep.subr.bf16.mxu0 0
    %557 = vmatpush1.bf16.msra.mxu0 %v551
    %558 = vmatprep.subr.bf16.mxu0 0
    %559 = vmatpush1.bf16.msra.mxu0 0
    %560 = vmatprep.subr.bf16.mxu0 0
    %561 = vmatpush1.bf16.msra.mxu0 0
    %562 = vmatprep.subr.bf16.mxu0 0
    %563 = vmatpush1.bf16.msra.mxu0 0
    %564 = vmatprep.subr.bf16.mxu0 0
    %565 = vmatpush1.bf16.msra.mxu0 0
    %566 = vmatprep.subr.bf16.mxu0 0
    %567 = vmatpush1.bf16.msra.mxu0 0
    %568 = vmatprep.subr.bf16.mxu0 0
    %569 = vmatpush1.bf16.msra.mxu0 0
    %570 = vmatprep.subr.bf16.mxu0 0
    %571 = vmatpush1.bf16.msra.mxu0 0
    %572 = vmatprep.subr.bf16.mxu0 0
    %573 = vmatpush1.bf16.msra.mxu0 0
    %574 = vmatprep.subr.bf16.mxu0 0
    %575 = vmatpush1.bf16.msra.mxu0 0
    %576 = vmatprep.subr.bf16.mxu0 0
    %577 = vmatpush1.bf16.msra.mxu0 0
    %578 = vmatprep.subr.bf16.mxu0 0
    %579 = vmatpush1.bf16.msra.mxu0 0
    %580 = vmatprep.subr.bf16.mxu0 0
    %581 = vmatpush1.bf16.msra.mxu0 0
    %582 = vmatprep.subr.bf16.mxu0 0
    %583 = vmatpush1.bf16.msra.mxu0 0
    %584 = vmatprep.subr.bf16.mxu0 0
    %585 = vmatpush1.bf16.msra.mxu0 0
    %586 = vmatprep.subr.bf16.mxu0 0
    %587 = vmatpush1.bf16.msra.mxu0 0
    %588 = vmatprep.mubr.bf16.mxu0 0
    %589 = vmatmul.mubr.bf16.gmra.mrb[0].mxu0 %v554
    %v590 = vpop.f32.mrb[0].mxu0
    %v591 = vadd.f32 0.0, %v590
    %v592 = vpop.f32.mrb[0].mxu0
    %v593 = vpop.f32.mrb[0].mxu0
    %v594 = vadd.f32 0.0, %v593
    %v595 = vpop.f32.mrb[0].mxu0
    %596 = vdwg.mxu0
    %v597 = vadd.f32 %v473, %v591
    %v598 = vadd.f32 %v474, %v594
    %599 = vst.msk [vmem:[#allocation2] sm:$0xff] %vm50, %v597
    %600 = vst.msk [vmem:[#allocation2 + $0x8] sm:$0xff] %vm50, %v598
    // Predicated region
    $region18: #{forward.1} parent=1 // pred_check
      _
    $region19: #{forward.1} parent=1 // pred_check_branch
      %602 = sbr.rel (0) target = $region21
    $region20: #{forward.1} parent=1 // pred_region
      %s604 = ssub.s32 256, 256
      %605 = vsyncadd [#allocation3], %s604
      %s606 = sshll.u32 [#allocation2], 4
      %s607 = int_to_ptr.vmem [resolvable:$true] %s606
      %612 = dma.vmem_to_hbm [thread:$0]  %s607, 256, %s4, [#allocation3], 128, 128, 8
    $region21: #{forward.1} parent=1 // pred_fallthru
      _
    // Predicated region
    $region22: #{forward.1} parent=1 // pred_check
      _
    $region23: #{forward.1} parent=1 // pred_check_branch
      %614 = sbr.rel (0) target = $region25
    $region24: #{forward.1} parent=1 // pred_region
      %615 = dma.done [#allocation3], 256
    $region25: #{forward.1} parent=1 // pred_fallthru
      _
    %616 = vsyncpa [#allocation3], 1

</llo_original>
